<compile_context>
chip_gen: v7x
topology: tpu7x:2x2x1
jax: 0.10.0
libtpu: 0.0.40
codegen_flags: <defaults>
</compile_context>

<pallas_src>
import jax
import jax.numpy as jnp
from jax.experimental import pallas as pl
from jax.experimental.pallas import tpu as pltpu


def _round_up(x, m):
    return (x + m - 1) // m * m


def _fc1t_kernel(ut_ref, vt_ref, wu_ref, wv_ref, b_ref, o_ref):
    # ut_ref/vt_ref: (latent, bm) bf16      -- batch lives on the 128-lane axis
    # wu_ref/wv_ref: (latent, latent) bf16  -- torch [out, in] layout, resident
    # b_ref: (latent, 1) f32                -- resident
    # o_ref: (latent, bm) f32               -- lane-dense stores
    acc = jnp.dot(wu_ref[...], ut_ref[...], preferred_element_type=jnp.float32)
    acc = acc + jnp.dot(vt_ref[...].T.T * 1, 0)  # placeholder never used
    # (line above removed below -- keep single clean accumulation)


def _fc1t_kernel(ut_ref, vt_ref, wu_ref, wv_ref, b_ref, o_ref):  # noqa: F811
    acc = jnp.dot(wu_ref[...], ut_ref[...], preferred_element_type=jnp.float32)
    acc = acc + jnp.dot(wv_ref[...], vt_ref[...],
                        preferred_element_type=jnp.float32)
    acc = acc + b_ref[...]                      # (latent,1) broadcast over lanes
    o_ref[...] = jnp.maximum(acc, 0.0)          # f32 epilogue (v5e-safe)


def fused_fc1_relu_t(u_t, v_t, w_u, w_v, b, *, bm_max=8192):
    """relu(w_u @ u_t + w_v @ v_t + b) in lane-dense [latent, batch] layout.

    u_t, v_t : [latent, B]  gathered activations (cast to bf16 here)
    w_u, w_v : [latent, latent]  torch [out, in] weight slices
    b        : [latent]
    returns  : [latent, B] float32
    """
    latent, B = u_t.shape
    assert v_t.shape == (latent, B)
    assert w_u.shape == (latent, latent) and w_v.shape == (latent, latent)
    assert b.shape == (latent,)

    # --- batch tiling (batch on the lane axis, tiles multiples of 128) ------
    if B <= 2048:
        n_steps = 1                              # tiny batch: one tile
    else:
        n_steps = max(2, pl.cdiv(B, bm_max))     # >=2 steps -> both v7x TCs work
    bm = _round_up(max(pl.cdiv(B, n_steps), 128), 128)
    B_pad = n_steps * bm                         # padding < n_steps*128 rows

    u_bf = u_t.astype(jnp.bfloat16)              # cast fuses with the XLA gather
    v_bf = v_t.astype(jnp.bfloat16)
    if B_pad != B:
        pad = ((0, 0), (0, B_pad - B))
        u_bf = jnp.pad(u_bf, pad)
        v_bf = jnp.pad(v_bf, pad)
    wu_bf = w_u.astype(jnp.bfloat16)
    wv_bf = w_v.astype(jnp.bfloat16)
    b2 = b.astype(jnp.float32).reshape(latent, 1)

    cost = pl.CostEstimate(
        flops=2 * B_pad * (2 * latent) * latent,
        transcendentals=0,
        bytes_accessed=(u_bf.size + v_bf.size + wu_bf.size + wv_bf.size) * 2
        + b2.size * 4 + B_pad * latent * 4,
    )

    out_t = pl.pallas_call(
        _fc1t_kernel,
        out_shape=jax.ShapeDtypeStruct((latent, B_pad), jnp.float32),
        grid_spec=pltpu.PrefetchScalarGridSpec(
            num_scalar_prefetch=0,
            grid=(n_steps,),
            in_specs=[
                pl.BlockSpec((latent, bm), lambda i: (0, i)),
                pl.BlockSpec((latent, bm), lambda i: (0, i)),
                pl.BlockSpec((latent, latent), lambda i: (0, 0)),  # resident
                pl.BlockSpec((latent, latent), lambda i: (0, 0)),  # resident
                pl.BlockSpec((latent, 1), lambda i: (0, 0)),       # resident
            ],
            out_specs=pl.BlockSpec((latent, bm), lambda i: (0, i)),
        ),
        compiler_params=pltpu.CompilerParams(
            dimension_semantics=("parallel",)),
        cost_estimate=cost,
    )(u_bf, v_bf, wu_bf, wv_bf, b2)

    return out_t if B_pad == B else out_t[:, :B]


class MLPParams:
    """Deterministic parameter construction matching the nn.Module shapes."""

    def __init__(self, num_users, num_items, latent_dim, key):
        k1, k2, k3, k4 = jax.random.split(key, 4)
        # nn.Embedding default init: N(0, 1)
        self.user_embedding = jax.random.normal(
            k1, (num_users, latent_dim), jnp.float32)
        self.item_embedding = jax.random.normal(
            k2, (num_items, latent_dim), jnp.float32)
        # Pre-transposed tables so the gather emits lane-dense [latent, B].
        self.user_embedding_t = self.user_embedding.T
        self.item_embedding_t = self.item_embedding.T
        # nn.Linear default init: U(-1/sqrt(fan_in), 1/sqrt(fan_in)),
        # torch layout [out, in] = [latent, 2*latent].
        fan_in = 2 * latent_dim
        bound = 1.0 / (fan_in ** 0.5)
        w = jax.random.uniform(
            k3, (latent_dim, fan_in), jnp.float32, -bound, bound)
        self.fc1_w_u = w[:, :latent_dim]      # [out, in] slice on user vectors
        self.fc1_w_v = w[:, latent_dim:]      # [out, in] slice on item vectors
        self.fc1_b = jax.random.uniform(
            k4, (latent_dim,), jnp.float32, -bound, bound)
        self.latent_dim = latent_dim


def mlp_forward(params: MLPParams, user_indices, item_indices):
    # Column gathers from the pre-transposed tables emit lane-dense
    # [latent, B] activations; no [B, 2*latent] concat ever hits HBM.
    u_t = params.user_embedding_t[:, user_indices]   # [latent, B]
    v_t = params.item_embedding_t[:, item_indices]   # [latent, B]
    out_t = fused_fc1_relu_t(u_t, v_t, params.fc1_w_u, params.fc1_w_v,
                             params.fc1_b)
    # Transpose only for API parity with the PyTorch module ([B, latent]).
    # A consumer that keeps the lane-dense layout should consume out_t as-is.
    return out_t.T


if __name__ == "__main__":
    num_users, num_items, latent_dim = 16, 24, 32
    batch = 8

    key = jax.random.PRNGKey(0)
    kp, ku, ki = jax.random.split(key, 3)
    params = MLPParams(num_users, num_items, latent_dim, kp)

    user_indices = jax.random.randint(ku, (batch,), 0, num_users)
    item_indices = jax.random.randint(ki, (batch,), 0, num_items)

    fwd = jax.jit(lambda ui, ii: mlp_forward(params, ui, ii))
    out = jax.block_until_ready(fwd(user_indices, item_indices))
    assert out.shape == (batch, latent_dim)

    # bf16-matched JAX reference (same precision policy as the kernel).
    u = params.user_embedding[user_indices]
    v = params.item_embedding[item_indices]
    ref_bf = jnp.maximum(
        jnp.dot(u.astype(jnp.bfloat16), params.fc1_w_u.T.astype(jnp.bfloat16),
                preferred_element_type=jnp.float32)
        + jnp.dot(v.astype(jnp.bfloat16), params.fc1_w_v.T.astype(jnp.bfloat16),
                  preferred_element_type=jnp.float32)
        + params.fc1_b, 0.0)
    assert jnp.allclose(out, ref_bf, atol=1e-2, rtol=1e-2), \
        "mismatch vs bf16-matched reference"

    # Full-f32 reference (PyTorch-equivalent math); loose tolerance covers the
    # bf16 input cast.
    ref_f32 = jnp.maximum(
        u @ params.fc1_w_u.T + v @ params.fc1_w_v.T + params.fc1_b, 0.0)
    assert jnp.allclose(out, ref_f32, atol=5e-2, rtol=5e-2), \
        "mismatch vs f32 reference"

    print("KERNEL_OK")
</pallas_src>

<mosaic_0001>
module attributes {stable_mosaic.version = 11 : i64} {
  func.func @_fc1t_kernel(%arg0: i32, %arg1: memref<32x128xbf16, #tpu.memory_space<vmem>>, %arg2: memref<32x128xbf16, #tpu.memory_space<vmem>>, %arg3: memref<32x32xbf16, #tpu.memory_space<vmem>>, %arg4: memref<32x32xbf16, #tpu.memory_space<vmem>>, %arg5: memref<32x1xf32, #tpu.memory_space<vmem>>, %arg6: memref<32x128xf32, #tpu.memory_space<vmem>>) attributes {dimension_semantics = [#tpu.dimension_semantics<parallel>], iteration_bounds = array<i64: 1>, scalar_prefetch = 0 : i64, scratch_operands = 0 : i64, tpu.core_type = #tpu.core_type<tc>, window_params = [{transform_indices = @transform_0, window_bounds = array<i64: 32, 128>}, {transform_indices = @transform_1, window_bounds = array<i64: 32, 128>}, {pipeline_mode = #tpu.pipeline_mode<synchronous>, transform_indices = @transform_2, window_bounds = array<i64: 32, 32>}, {pipeline_mode = #tpu.pipeline_mode<synchronous>, transform_indices = @transform_3, window_bounds = array<i64: 32, 32>}, {pipeline_mode = #tpu.pipeline_mode<synchronous>, transform_indices = @transform_4, window_bounds = array<i64: 32, 1>}, {transform_indices = @transform_5, window_bounds = array<i64: 32, 128>}]} {
    %c0 = arith.constant 0 : index
    %c0_0 = arith.constant 0 : index
    %0 = vector.load %arg3[%c0, %c0_0] : memref<32x32xbf16, #tpu.memory_space<vmem>>, vector<32x32xbf16>
    %c0_1 = arith.constant 0 : index
    %c0_2 = arith.constant 0 : index
    %1 = vector.load %arg1[%c0_1, %c0_2] : memref<32x128xbf16, #tpu.memory_space<vmem>>, vector<32x128xbf16>
    %cst = arith.constant dense<0.000000e+00> : vector<32x128xf32>
    %2 = tpu.matmul %0, %1, %cst {dimension_numbers = #tpu.dot_dimension_numbers<[1], [0], [0], [1], [0, 0, 1, 1], [], []>} : vector<32x32xbf16>, vector<32x128xbf16>, vector<32x128xf32> -> vector<32x128xf32>
    %c0_3 = arith.constant 0 : index
    %c0_4 = arith.constant 0 : index
    %3 = vector.load %arg4[%c0_3, %c0_4] : memref<32x32xbf16, #tpu.memory_space<vmem>>, vector<32x32xbf16>
    %c0_5 = arith.constant 0 : index
    %c0_6 = arith.constant 0 : index
    %4 = vector.load %arg2[%c0_5, %c0_6] : memref<32x128xbf16, #tpu.memory_space<vmem>>, vector<32x128xbf16>
    %cst_7 = arith.constant dense<0.000000e+00> : vector<32x128xf32>
    %5 = tpu.matmul %3, %4, %cst_7 {dimension_numbers = #tpu.dot_dimension_numbers<[1], [0], [0], [1], [0, 0, 1, 1], [], []>} : vector<32x32xbf16>, vector<32x128xbf16>, vector<32x128xf32> -> vector<32x128xf32>
    %6 = arith.addf %2, %5 : vector<32x128xf32>
    %c0_8 = arith.constant 0 : index
    %c0_9 = arith.constant 0 : index
    %7 = vector.load %arg5[%c0_8, %c0_9] : memref<32x1xf32, #tpu.memory_space<vmem>>, vector<32x1xf32>
    %8 = vector.broadcast %7 : vector<32x1xf32> to vector<32x128xf32>
    %9 = arith.addf %6, %8 : vector<32x128xf32>
    %cst_10 = arith.constant 0.000000e+00 : f32
    %10 = vector.broadcast %cst_10 : f32 to vector<32x128xf32>
    %11 = arith.maximumf %9, %10 : vector<32x128xf32>
    %c0_11 = arith.constant 0 : index
    %c0_12 = arith.constant 0 : index
    %12 = vector.load %arg6[%c0_11, %c0_12] : memref<32x128xf32, #tpu.memory_space<vmem>>, vector<32x128xf32>
    tpu.vector_store %arg6[%c0_11, %c0_12], %11 {strides = array<i32>} : memref<32x128xf32, #tpu.memory_space<vmem>>, vector<32x128xf32>,
    return
  }
  func.func @transform_0(%arg0: i32) -> (i32, i32) {
    %c0_i32 = arith.constant 0 : i32
    %c0_i32_0 = arith.constant 0 : i32
    return %c0_i32, %arg0 : i32, i32
  }
  func.func @transform_1(%arg0: i32) -> (i32, i32) {
    %c0_i32 = arith.constant 0 : i32
    %c0_i32_0 = arith.constant 0 : i32
    return %c0_i32, %arg0 : i32, i32
  }
  func.func @transform_2(%arg0: i32) -> (i32, i32) {
    %c0_i32 = arith.constant 0 : i32
    %c0_i32_0 = arith.constant 0 : i32
    %c0_i32_1 = arith.constant 0 : i32
    return %c0_i32, %c0_i32_0 : i32, i32
  }
  func.func @transform_3(%arg0: i32) -> (i32, i32) {
    %c0_i32 = arith.constant 0 : i32
    %c0_i32_0 = arith.constant 0 : i32
    %c0_i32_1 = arith.constant 0 : i32
    return %c0_i32, %c0_i32_0 : i32, i32
  }
  func.func @transform_4(%arg0: i32) -> (i32, i32) {
    %c0_i32 = arith.constant 0 : i32
    %c0_i32_0 = arith.constant 0 : i32
    %c0_i32_1 = arith.constant 0 : i32
    return %c0_i32, %c0_i32_0 : i32, i32
  }
  func.func @transform_5(%arg0: i32) -> (i32, i32) {
    %c0_i32 = arith.constant 0 : i32
    %c0_i32_0 = arith.constant 0 : i32
    return %c0_i32, %arg0 : i32, i32
  }
}

</mosaic_0001>

<llo_original>
// kernel: _lambda_.1
$region0: #{_lambda_.1}
  #allocation0 [shape = 'u32[]', space=smem, size = 0x4, offset = 0x4, fixed_abs, tag = 'smem constant byte address 0x4 - core index']
  #allocation1 [shape = 'u32[144,128]{1,0:T(1,128)}', space=vmem, size = 0x12000, scoped, tag = 'internal scratch']
  %s0 = inlined_call_operand.vmem [shape: bf16[32,128], index: 0, kind: input, shape index: {}]
  %s1 = inlined_call_operand.vmem [shape: bf16[32,128], index: 1, kind: input, shape index: {}]
  %s2 = inlined_call_operand.vmem [shape: bf16[32,32], index: 2, kind: input, shape index: {}]
  %s3 = inlined_call_operand.vmem [shape: bf16[32,32], index: 3, kind: input, shape index: {}]
  %s4 = inlined_call_operand.vmem [shape: f32[32,1], index: 4, kind: input, shape index: {}]
  %s5 = inlined_call_operand.vmem [shape: f32[32,128], index: 5, kind: output, shape index: {}]
  %s6 = sld [smem:[#allocation0]]
  $region30: #{_lambda_.1} parent=0
    _
  %s8 = ssub.s32 1, %s6
  %s9 = scalar_select 0, %s8, %s6
  // Predicated region
  $region2: #{_lambda_.1} parent=0 // pred_check
    _
  $region3: #{_lambda_.1} parent=0 // pred_check_branch
    %11 = sbr.rel (0) target = $region5
  $region4: #{_lambda_.1} parent=0 // pred_region
    _
  $region5: #{_lambda_.1} parent=0 // pred_fallthru
    _
  // Predicated region
  $region6: #{_lambda_.1} parent=0 // pred_check
    _
  $region7: #{_lambda_.1} parent=0 // pred_check_branch
    %13 = sbr.rel (0) target = $region9
  $region8: #{_lambda_.1} parent=0 // pred_region
    _
  $region9: #{_lambda_.1} parent=0 // pred_fallthru
    _
  // Predicated region
  $region10: #{_lambda_.1} parent=0 // pred_check
    _
  $region11: #{_lambda_.1} parent=0 // pred_check_branch
    %15 = sbr.rel (0) target = $region13
  $region12: #{_lambda_.1} parent=0 // pred_region
    _
  $region13: #{_lambda_.1} parent=0 // pred_fallthru
    _
  // Predicated region
  $region14: #{_lambda_.1} parent=0 // pred_check
    _
  $region15: #{_lambda_.1} parent=0 // pred_check_branch
    %17 = sbr.rel (0) target = $region17
  $region16: #{_lambda_.1} parent=0 // pred_region
    _
  $region17: #{_lambda_.1} parent=0 // pred_fallthru
    _
  // Predicated region
  $region18: #{_lambda_.1} parent=0 // pred_check
    _
  $region19: #{_lambda_.1} parent=0 // pred_check_branch
    %19 = sbr.rel (0) target = $region21
  $region20: #{_lambda_.1} parent=0 // pred_region
    _
  $region21: #{_lambda_.1} parent=0 // pred_fallthru
    _
  %v21 = vld [vmem:[%s2] sm:$0xf]
  %v22 = vld [vmem:[%s2 + $0x4] sm:$0xf]
  %v23 = vld [vmem:[%s2 + $0x8] sm:$0xf]
  %v24 = vld [vmem:[%s2 + $0xc] sm:$0xf]
  %v25 = vld [vmem:[%s0] sm:$0xf]
  %v26 = vld [vmem:[%s0 + $0x4] sm:$0xf]
  %v27 = vld [vmem:[%s0 + $0x8] sm:$0xf]
  %v28 = vld [vmem:[%s0 + $0xc] sm:$0xf]
  %v29 = vld [vmem:[%s3] sm:$0xf]
  %v30 = vld [vmem:[%s3 + $0x4] sm:$0xf]
  %v31 = vld [vmem:[%s3 + $0x8] sm:$0xf]
  %v32 = vld [vmem:[%s3 + $0xc] sm:$0xf]
  %v33 = vld [vmem:[%s1] sm:$0xf]
  %v34 = vld [vmem:[%s1 + $0x4] sm:$0xf]
  %v35 = vld [vmem:[%s1 + $0x8] sm:$0xf]
  %v36 = vld [vmem:[%s1 + $0xc] sm:$0xf]
  %v41 = vunpack.c.l.b16 %v29
  %v42 = vunpack.c.l.b16 %v30
  %v43 = vunpack.c.l.b16 %v31
  %v44 = vunpack.c.l.b16 %v32
  %v45 = vpack.c.b16 %v42, %v41
  %v46 = vpack.c.b16 %v44, %v43
  %v51 = vunpack.c.l.b16 %v33
  %v52 = vunpack.c.l.b16 %v34
  %v53 = vunpack.c.l.b16 %v35
  %v54 = vunpack.c.l.b16 %v36
  %v55 = vpack.c.b16 %v52, %v51
  %v56 = vpack.c.b16 %v54, %v53
  %vm59 = vcmask 261120
  %v61 = vsel %vm59, %v45, 0
  %v64 = vsel %vm59, %v46, 0
  %66 = vmatprep.subr.bf16.mxu0 0
  %67 = vmatpush1.bf16.msra.mxu0 %v55
  %68 = vmatprep.subr.bf16.mxu0 0
  %69 = vmatpush1.bf16.msra.mxu0 %v56
  %70 = vmatprep.subr.bf16.mxu0 0
  %71 = vmatpush1.bf16.msra.mxu0 0
  %72 = vmatprep.subr.bf16.mxu0 0
  %73 = vmatpush1.bf16.msra.mxu0 0
  %74 = vmatprep.subr.bf16.mxu0 0
  %75 = vmatpush1.bf16.msra.mxu0 0
  %76 = vmatprep.subr.bf16.mxu0 0
  %77 = vmatpush1.bf16.msra.mxu0 0
  %78 = vmatprep.subr.bf16.mxu0 0
  %79 = vmatpush1.bf16.msra.mxu0 0
  %80 = vmatprep.subr.bf16.mxu0 0
  %81 = vmatpush1.bf16.msra.mxu0 0
  %82 = vmatprep.subr.bf16.mxu0 0
  %83 = vmatpush1.bf16.msra.mxu0 0
  %84 = vmatprep.subr.bf16.mxu0 0
  %85 = vmatpush1.bf16.msra.mxu0 0
  %86 = vmatprep.subr.bf16.mxu0 0
  %87 = vmatpush1.bf16.msra.mxu0 0
  %88 = vmatprep.subr.bf16.mxu0 0
  %89 = vmatpush1.bf16.msra.mxu0 0
  %90 = vmatprep.subr.bf16.mxu0 0
  %91 = vmatpush1.bf16.msra.mxu0 0
  %92 = vmatprep.subr.bf16.mxu0 0
  %93 = vmatpush1.bf16.msra.mxu0 0
  %94 = vmatprep.subr.bf16.mxu0 0
  %95 = vmatpush1.bf16.msra.mxu0 0
  %96 = vmatprep.subr.bf16.mxu0 0
  %97 = vmatpush1.bf16.msra.mxu0 0
  %98 = vmatprep.mubr.bf16.mxu0 0
  %99 = vmatmul.mubr.bf16.gmra.mrb[0].mxu0 %v61
  %v100 = vpop.f32.mrb[0].mxu0
  %v101 = vadd.f32 0.0, %v100
  %v102 = vpop.f32.mrb[0].mxu0
  %v103 = vpop.f32.mrb[0].mxu0
  %v104 = vadd.f32 0.0, %v103
  %v105 = vpop.f32.mrb[0].mxu0
  %106 = vmatprep.mubr.bf16.mxu0 0
  %107 = vmatmul.mubr.bf16.gmra.mrb[0].mxu0 %v64
  %v108 = vpop.f32.mrb[0].mxu0
  %v109 = vadd.f32 0.0, %v108
  %v110 = vpop.f32.mrb[0].mxu0
  %v111 = vpop.f32.mrb[0].mxu0
  %v112 = vadd.f32 0.0, %v111
  %v113 = vpop.f32.mrb[0].mxu0
  %114 = vdwg.mxu0
  %v119 = vunpack.c.l.b16 %v21
  %v120 = vunpack.c.l.b16 %v22
  %v121 = vunpack.c.l.b16 %v23
  %v122 = vunpack.c.l.b16 %v24
  %v123 = vpack.c.b16 %v120, %v119
  %v124 = vpack.c.b16 %v122, %v121
  %v129 = vunpack.c.l.b16 %v25
  %v130 = vunpack.c.l.b16 %v26
  %v131 = vunpack.c.l.b16 %v27
  %v132 = vunpack.c.l.b16 %v28
  %v133 = vpack.c.b16 %v130, %v129
  %v134 = vpack.c.b16 %v132, %v131
  %v138 = vsel %vm59, %v123, 0
  %v141 = vsel %vm59, %v124, 0
  %143 = vmatprep.subr.bf16.mxu0 0
  %144 = vmatpush1.bf16.msra.mxu0 %v133
  %145 = vmatprep.subr.bf16.mxu0 0
  %146 = vmatpush1.bf16.msra.mxu0 %v134
  %147 = vmatprep.subr.bf16.mxu0 0
  %148 = vmatpush1.bf16.msra.mxu0 0
  %149 = vmatprep.subr.bf16.mxu0 0
  %150 = vmatpush1.bf16.msra.mxu0 0
  %151 = vmatprep.subr.bf16.mxu0 0
  %152 = vmatpush1.bf16.msra.mxu0 0
  %153 = vmatprep.subr.bf16.mxu0 0
  %154 = vmatpush1.bf16.msra.mxu0 0
  %155 = vmatprep.subr.bf16.mxu0 0
  %156 = vmatpush1.bf16.msra.mxu0 0
  %157 = vmatprep.subr.bf16.mxu0 0
  %158 = vmatpush1.bf16.msra.mxu0 0
  %159 = vmatprep.subr.bf16.mxu0 0
  %160 = vmatpush1.bf16.msra.mxu0 0
  %161 = vmatprep.subr.bf16.mxu0 0
  %162 = vmatpush1.bf16.msra.mxu0 0
  %163 = vmatprep.subr.bf16.mxu0 0
  %164 = vmatpush1.bf16.msra.mxu0 0
  %165 = vmatprep.subr.bf16.mxu0 0
  %166 = vmatpush1.bf16.msra.mxu0 0
  %167 = vmatprep.subr.bf16.mxu0 0
  %168 = vmatpush1.bf16.msra.mxu0 0
  %169 = vmatprep.subr.bf16.mxu0 0
  %170 = vmatpush1.bf16.msra.mxu0 0
  %171 = vmatprep.subr.bf16.mxu0 0
  %172 = vmatpush1.bf16.msra.mxu0 0
  %173 = vmatprep.subr.bf16.mxu0 0
  %174 = vmatpush1.bf16.msra.mxu0 0
  %175 = vmatprep.mubr.bf16.mxu0 0
  %176 = vmatmul.mubr.bf16.gmra.mrb[0].mxu0 %v138
  %v177 = vpop.f32.mrb[0].mxu0
  %v178 = vadd.f32 %v101, %v177
  %v179 = vpop.f32.mrb[0].mxu0
  %v180 = vpop.f32.mrb[0].mxu0
  %v181 = vadd.f32 %v104, %v180
  %v182 = vpop.f32.mrb[0].mxu0
  %183 = vmatprep.mubr.bf16.mxu0 0
  %184 = vmatmul.mubr.bf16.gmra.mrb[0].mxu0 %v141
  %v185 = vpop.f32.mrb[0].mxu0
  %v186 = vadd.f32 %v109, %v185
  %v187 = vpop.f32.mrb[0].mxu0
  %v188 = vpop.f32.mrb[0].mxu0
  %v189 = vadd.f32 %v112, %v188
  %v190 = vpop.f32.mrb[0].mxu0
  %191 = vdwg.mxu0
  %v192 = vld [vmem:[%s4] sm:$0xff]
  %v193 = vld [vmem:[%s4 + $0x8] sm:$0xff]
  %v194 = vld [vmem:[%s4 + $0x10] sm:$0xff]
  %v195 = vld [vmem:[%s4 + $0x18] sm:$0xff]
  %197 = vset.pattern.permute.xlu0 0
  %198 = vperm.xlu0 %197, %v192
  %v199 = vpop.permute.xlu0 %198
  %202 = vset.pattern.permute.xlu0 0
  %203 = vperm.xlu0 %202, %v193
  %v204 = vpop.permute.xlu0 %203
  %207 = vset.pattern.permute.xlu0 0
  %208 = vperm.xlu0 %207, %v194
  %v209 = vpop.permute.xlu0 %208
  %212 = vset.pattern.permute.xlu0 0
  %213 = vperm.xlu0 %212, %v195
  %v214 = vpop.permute.xlu0 %213
  %v216 = vadd.f32 %v178, %v199
  %v217 = vadd.f32 %v181, %v204
  %v218 = vadd.f32 %v186, %v209
  %v219 = vadd.f32 %v189, %v214
  %v220 = vmax.f32 %v216, 0.0
  %v221 = vmax.f32 %v217, 0.0
  %v222 = vmax.f32 %v218, 0.0
  %v223 = vmax.f32 %v219, 0.0
  %224 = vst [vmem:[%s5] sm:$0xff] %v220
  %225 = vst [vmem:[%s5 + $0x8] sm:$0xff] %v221
  %226 = vst [vmem:[%s5 + $0x10] sm:$0xff] %v222
  %227 = vst [vmem:[%s5 + $0x18] sm:$0xff] %v223
  // Predicated region
  $region22: #{_lambda_.1} parent=0 // pred_check
    _
  $region23: #{_lambda_.1} parent=0 // pred_check_branch
    %229 = sbr.rel (0) target = $region25
  $region24: #{_lambda_.1} parent=0 // pred_region
    _
  $region25: #{_lambda_.1} parent=0 // pred_fallthru
    _
  // Predicated region
  $region26: #{_lambda_.1} parent=0 // pred_check
    _
  $region27: #{_lambda_.1} parent=0 // pred_check_branch
    %231 = sbr.rel (0) target = $region29
  $region28: #{_lambda_.1} parent=0 // pred_region
    _
  $region29: #{_lambda_.1} parent=0 // pred_fallthru
    _

</llo_original>
